<compile_context>
chip_gen: v7x
topology: tpu7x:2x2x1
jax: 0.10.0
libtpu: 0.0.40
codegen_flags: <defaults>
</compile_context>

<pallas_src>
import numpy as np
import jax
import jax.numpy as jnp
from jax.experimental import pallas as pl
from jax.experimental.pallas import tpu as pltpu


def _mlp_kernel(x_ref, *rest):
    """Full MLP forward for one batch tile.

    rest = (w0, b0, ..., w_{L-1}, b_{L-1}, w_final_row, b_final, out_ref)
      * hidden layers: MXU matmul (f32 accumulate) + f32 bias + ReLU (VPU)
      * final layer  : VPU multiply + row reduce -> lane-dense (1, tile) output
    """
    *param_refs, out_ref = rest
    n_hidden = (len(param_refs) - 2) // 2

    h = x_ref[...].astype(jnp.float32)                  # (tile, d)
    for i in range(n_hidden):
        w = param_refs[2 * i][...]                      # (prev, hidden) f32/bf16
        b = param_refs[2 * i + 1][...]                  # (1, hidden) f32
        h = jnp.dot(h.astype(w.dtype), w, preferred_element_type=jnp.float32) + b
        h = jnp.maximum(h, 0.0)                         # ReLU on f32 accumulator

    w_row = param_refs[-2][...]                         # (1, hidden) f32
    b_fin = param_refs[-1][...]                         # (1, 1) f32
    y = jnp.sum(h * w_row, axis=-1).reshape(1, -1) + b_fin   # (1, tile)
    out_ref[...] = y.astype(out_ref.dtype)


def init_deepnn_params(key, d, hidden_size, depth, mode="special"):
    """Deterministic parameter init replicating DeepNN.__init__ ('special' mode)."""
    params = []
    prev_dim = d
    gain = np.sqrt(2.0)  # nn.init.calculate_gain('relu')
    for _ in range(depth):
        key, sub = jax.random.split(key)
        std = gain / np.sqrt(prev_dim)
        w = std * jax.random.normal(sub, (prev_dim, hidden_size), dtype=jnp.float32)
        b = jnp.zeros((1, hidden_size), dtype=jnp.float32)
        params.extend([w, b])
        prev_dim = hidden_size
    key, sub = jax.random.split(key)
    w_final = 0.01 * jax.random.normal(sub, (prev_dim, 1), dtype=jnp.float32)
    b_final = jnp.zeros((1, 1), dtype=jnp.float32)
    params.extend([w_final, b_final])
    return params


def deepnn_forward(x, params, *, batch_tile=256, compute_dtype=jnp.float32):
    """DeepNN forward pass as a single Pallas kernel, tiled over the batch."""
    batch, d = x.shape

    # Single-block launch for small batches; otherwise tile with 128-multiple tiles.
    if batch <= batch_tile:
        tile = batch
        x_pad = x
    else:
        tile = batch_tile
        assert tile % 128 == 0, "batch_tile must be a multiple of 128 when tiling"
        pad = (-batch) % tile
        x_pad = jnp.pad(x, ((0, pad), (0, 0))) if pad else x
    padded_batch = x_pad.shape[0]
    grid = (padded_batch // tile,)

    # Hidden-layer weights optionally in bf16 for the MXU; biases and the final
    # layer stay f32 (f32 accumulate + f32 elementwise keeps the VPU path clean).
    n_hidden = len(params) // 2 - 1
    kernel_params = []
    for i in range(n_hidden):
        kernel_params.append(params[2 * i].astype(compute_dtype))
        kernel_params.append(params[2 * i + 1].astype(jnp.float32))
    kernel_params.append(params[-2].reshape(1, -1).astype(jnp.float32))  # (1, hidden)
    kernel_params.append(params[-1].astype(jnp.float32))                 # (1, 1)

    in_specs = [pl.BlockSpec((tile, d), lambda i: (i, 0))]
    for p in kernel_params:
        # Grid-invariant full-array blocks (all 2-D, tiny for this model).
        in_specs.append(pl.BlockSpec(p.shape, lambda i: (0, 0)))

    # Lane-dense output: one (1, tile) row block per grid step.
    out_spec = pl.BlockSpec((1, tile), lambda i: (0, i))

    out = pl.pallas_call(
        _mlp_kernel,
        out_shape=jax.ShapeDtypeStruct((1, padded_batch), jnp.float32),
        grid=grid,
        in_specs=in_specs,
        out_specs=out_spec,
        compiler_params=pltpu.CompilerParams(
            dimension_semantics=("parallel",),
        ),
    )(x_pad, *kernel_params)

    # Matches torch's .squeeze() on a (batch, 1) output -> (batch,)
    return out.reshape(-1)[:batch]


def deepnn_forward_ref(x, params):
    """Pure-JAX reference for correctness check."""
    n_layers = len(params) // 2
    h = x
    for i in range(n_layers):
        w, b = params[2 * i], params[2 * i + 1]
        h = h @ w + b
        if i < n_layers - 1:
            h = jnp.maximum(h, 0.0)
    return jnp.squeeze(h, axis=-1)


if __name__ == "__main__":
    d = 8
    hidden_size = 32
    depth = 3

    key = jax.random.PRNGKey(0)
    key, xkey = jax.random.split(key)
    params = init_deepnn_params(key, d, hidden_size, depth, mode="special")

    # Case 1: toy batch -> single-block launch (grid=(1,)).
    batch_small = 16
    x_small = jax.random.normal(xkey, (batch_small, d), dtype=jnp.float32)
    y_small = jax.block_until_ready(deepnn_forward(x_small, params))
    np.testing.assert_allclose(
        np.asarray(y_small), np.asarray(deepnn_forward_ref(x_small, params)),
        rtol=1e-5, atol=1e-5)
    assert y_small.shape == (batch_small,)

    # Case 2: larger batch -> tiled launch (grid=(2,), 256-row tiles, lane-dense out).
    batch_big = 512
    key, xkey2 = jax.random.split(key)
    x_big = jax.random.normal(xkey2, (batch_big, d), dtype=jnp.float32)
    y_big = jax.block_until_ready(deepnn_forward(x_big, params, batch_tile=256))
    np.testing.assert_allclose(
        np.asarray(y_big), np.asarray(deepnn_forward_ref(x_big, params)),
        rtol=1e-5, atol=1e-5)
    assert y_big.shape == (batch_big,)

    # Case 3: bf16 hidden-layer matmuls (f32 accumulate) -> looser tolerance.
    y_bf16 = jax.block_until_ready(
        deepnn_forward(x_big, params, batch_tile=256, compute_dtype=jnp.bfloat16))
    np.testing.assert_allclose(
        np.asarray(y_bf16), np.asarray(deepnn_forward_ref(x_big, params)),
        rtol=0.0, atol=5e-2)

    print("KERNEL_OK")
</pallas_src>

<mosaic_0001>
module attributes {stable_mosaic.version = 11 : i64} {
  func.func @_mlp_kernel(%arg0: i32, %arg1: memref<16x8xf32, #tpu.memory_space<vmem>>, %arg2: memref<8x32xf32, #tpu.memory_space<vmem>>, %arg3: memref<1x32xf32, #tpu.memory_space<vmem>>, %arg4: memref<32x32xf32, #tpu.memory_space<vmem>>, %arg5: memref<1x32xf32, #tpu.memory_space<vmem>>, %arg6: memref<32x32xf32, #tpu.memory_space<vmem>>, %arg7: memref<1x32xf32, #tpu.memory_space<vmem>>, %arg8: memref<1x32xf32, #tpu.memory_space<vmem>>, %arg9: memref<1x1xf32, #tpu.memory_space<vmem>>, %arg10: memref<1x16xf32, #tpu.memory_space<vmem>>) attributes {dimension_semantics = [#tpu.dimension_semantics<parallel>], iteration_bounds = array<i64: 1>, scalar_prefetch = 0 : i64, scratch_operands = 0 : i64, tpu.core_type = #tpu.core_type<tc>, window_params = [{transform_indices = @transform_0, window_bounds = array<i64: 16, 8>}, {pipeline_mode = #tpu.pipeline_mode<synchronous>, transform_indices = @transform_1, window_bounds = array<i64: 8, 32>}, {pipeline_mode = #tpu.pipeline_mode<synchronous>, transform_indices = @transform_2, window_bounds = array<i64: 1, 32>}, {pipeline_mode = #tpu.pipeline_mode<synchronous>, transform_indices = @transform_3, window_bounds = array<i64: 32, 32>}, {pipeline_mode = #tpu.pipeline_mode<synchronous>, transform_indices = @transform_4, window_bounds = array<i64: 1, 32>}, {pipeline_mode = #tpu.pipeline_mode<synchronous>, transform_indices = @transform_5, window_bounds = array<i64: 32, 32>}, {pipeline_mode = #tpu.pipeline_mode<synchronous>, transform_indices = @transform_6, window_bounds = array<i64: 1, 32>}, {pipeline_mode = #tpu.pipeline_mode<synchronous>, transform_indices = @transform_7, window_bounds = array<i64: 1, 32>}, {pipeline_mode = #tpu.pipeline_mode<synchronous>, transform_indices = @transform_8, window_bounds = array<i64: 1, 1>}, {transform_indices = @transform_9, window_bounds = array<i64: 1, 16>}]} {
    %c0 = arith.constant 0 : index
    %c0_0 = arith.constant 0 : index
    %0 = vector.load %arg1[%c0, %c0_0] : memref<16x8xf32, #tpu.memory_space<vmem>>, vector<16x8xf32>
    %c0_1 = arith.constant 0 : index
    %c0_2 = arith.constant 0 : index
    %1 = vector.load %arg2[%c0_1, %c0_2] : memref<8x32xf32, #tpu.memory_space<vmem>>, vector<8x32xf32>
    %c0_3 = arith.constant 0 : index
    %c0_4 = arith.constant 0 : index
    %2 = vector.load %arg3[%c0_3, %c0_4] : memref<1x32xf32, #tpu.memory_space<vmem>>, vector<1x32xf32>
    %cst = arith.constant dense<0.000000e+00> : vector<16x32xf32>
    %3 = tpu.matmul %0, %1, %cst {dimension_numbers = #tpu.dot_dimension_numbers<[1], [0], [0], [1], [0, 0, 1, 1], [], []>} : vector<16x8xf32>, vector<8x32xf32>, vector<16x32xf32> -> vector<16x32xf32>
    %4 = vector.broadcast %2 : vector<1x32xf32> to vector<16x32xf32>
    %5 = arith.addf %3, %4 : vector<16x32xf32>
    %cst_5 = arith.constant 0.000000e+00 : f32
    %6 = vector.broadcast %cst_5 : f32 to vector<16x32xf32>
    %7 = arith.maximumf %5, %6 : vector<16x32xf32>
    %c0_6 = arith.constant 0 : index
    %c0_7 = arith.constant 0 : index
    %8 = vector.load %arg4[%c0_6, %c0_7] : memref<32x32xf32, #tpu.memory_space<vmem>>, vector<32x32xf32>
    %c0_8 = arith.constant 0 : index
    %c0_9 = arith.constant 0 : index
    %9 = vector.load %arg5[%c0_8, %c0_9] : memref<1x32xf32, #tpu.memory_space<vmem>>, vector<1x32xf32>
    %cst_10 = arith.constant dense<0.000000e+00> : vector<16x32xf32>
    %10 = tpu.matmul %7, %8, %cst_10 {dimension_numbers = #tpu.dot_dimension_numbers<[1], [0], [0], [1], [0, 0, 1, 1], [], []>} : vector<16x32xf32>, vector<32x32xf32>, vector<16x32xf32> -> vector<16x32xf32>
    %11 = vector.broadcast %9 : vector<1x32xf32> to vector<16x32xf32>
    %12 = arith.addf %10, %11 : vector<16x32xf32>
    %cst_11 = arith.constant 0.000000e+00 : f32
    %13 = vector.broadcast %cst_11 : f32 to vector<16x32xf32>
    %14 = arith.maximumf %12, %13 : vector<16x32xf32>
    %c0_12 = arith.constant 0 : index
    %c0_13 = arith.constant 0 : index
    %15 = vector.load %arg6[%c0_12, %c0_13] : memref<32x32xf32, #tpu.memory_space<vmem>>, vector<32x32xf32>
    %c0_14 = arith.constant 0 : index
    %c0_15 = arith.constant 0 : index
    %16 = vector.load %arg7[%c0_14, %c0_15] : memref<1x32xf32, #tpu.memory_space<vmem>>, vector<1x32xf32>
    %cst_16 = arith.constant dense<0.000000e+00> : vector<16x32xf32>
    %17 = tpu.matmul %14, %15, %cst_16 {dimension_numbers = #tpu.dot_dimension_numbers<[1], [0], [0], [1], [0, 0, 1, 1], [], []>} : vector<16x32xf32>, vector<32x32xf32>, vector<16x32xf32> -> vector<16x32xf32>
    %18 = vector.broadcast %16 : vector<1x32xf32> to vector<16x32xf32>
    %19 = arith.addf %17, %18 : vector<16x32xf32>
    %cst_17 = arith.constant 0.000000e+00 : f32
    %20 = vector.broadcast %cst_17 : f32 to vector<16x32xf32>
    %21 = arith.maximumf %19, %20 : vector<16x32xf32>
    %c0_18 = arith.constant 0 : index
    %c0_19 = arith.constant 0 : index
    %22 = vector.load %arg8[%c0_18, %c0_19] : memref<1x32xf32, #tpu.memory_space<vmem>>, vector<1x32xf32>
    %c0_20 = arith.constant 0 : index
    %c0_21 = arith.constant 0 : index
    %23 = vector.load %arg9[%c0_20, %c0_21] : memref<1x1xf32, #tpu.memory_space<vmem>>, vector<1x1xf32>
    %24 = vector.broadcast %22 : vector<1x32xf32> to vector<16x32xf32>
    %25 = arith.mulf %21, %24 : vector<16x32xf32>
    %cst_22 = arith.constant dense<0.000000e+00> : vector<16xf32>
    %26 = vector.multi_reduction <add>, %25, %cst_22 [1] : vector<16x32xf32> to vector<16xf32>
    %27 = vector.shape_cast %26 : vector<16xf32> to vector<1x16xf32>
    %28 = vector.broadcast %23 : vector<1x1xf32> to vector<1x16xf32>
    %29 = arith.addf %27, %28 : vector<1x16xf32>
    %c0_23 = arith.constant 0 : index
    %c0_24 = arith.constant 0 : index
    %30 = vector.load %arg10[%c0_23, %c0_24] : memref<1x16xf32, #tpu.memory_space<vmem>>, vector<1x16xf32>
    tpu.vector_store %arg10[%c0_23, %c0_24], %29 {strides = array<i32>} : memref<1x16xf32, #tpu.memory_space<vmem>>, vector<1x16xf32>,
    return
  }
  func.func @transform_0(%arg0: i32) -> (i32, i32) {
    %c0_i32 = arith.constant 0 : i32
    %c0_i32_0 = arith.constant 0 : i32
    return %arg0, %c0_i32 : i32, i32
  }
  func.func @transform_1(%arg0: i32) -> (i32, i32) {
    %c0_i32 = arith.constant 0 : i32
    %c0_i32_0 = arith.constant 0 : i32
    %c0_i32_1 = arith.constant 0 : i32
    return %c0_i32, %c0_i32_0 : i32, i32
  }
  func.func @transform_2(%arg0: i32) -> (i32, i32) {
    %c0_i32 = arith.constant 0 : i32
    %c0_i32_0 = arith.constant 0 : i32
    %c0_i32_1 = arith.constant 0 : i32
    return %c0_i32, %c0_i32_0 : i32, i32
  }
  func.func @transform_3(%arg0: i32) -> (i32, i32) {
    %c0_i32 = arith.constant 0 : i32
    %c0_i32_0 = arith.constant 0 : i32
    %c0_i32_1 = arith.constant 0 : i32
    return %c0_i32, %c0_i32_0 : i32, i32
  }
  func.func @transform_4(%arg0: i32) -> (i32, i32) {
    %c0_i32 = arith.constant 0 : i32
    %c0_i32_0 = arith.constant 0 : i32
    %c0_i32_1 = arith.constant 0 : i32
    return %c0_i32, %c0_i32_0 : i32, i32
  }
  func.func @transform_5(%arg0: i32) -> (i32, i32) {
    %c0_i32 = arith.constant 0 : i32
    %c0_i32_0 = arith.constant 0 : i32
    %c0_i32_1 = arith.constant 0 : i32
    return %c0_i32, %c0_i32_0 : i32, i32
  }
  func.func @transform_6(%arg0: i32) -> (i32, i32) {
    %c0_i32 = arith.constant 0 : i32
    %c0_i32_0 = arith.constant 0 : i32
    %c0_i32_1 = arith.constant 0 : i32
    return %c0_i32, %c0_i32_0 : i32, i32
  }
  func.func @transform_7(%arg0: i32) -> (i32, i32) {
    %c0_i32 = arith.constant 0 : i32
    %c0_i32_0 = arith.constant 0 : i32
    %c0_i32_1 = arith.constant 0 : i32
    return %c0_i32, %c0_i32_0 : i32, i32
  }
  func.func @transform_8(%arg0: i32) -> (i32, i32) {
    %c0_i32 = arith.constant 0 : i32
    %c0_i32_0 = arith.constant 0 : i32
    %c0_i32_1 = arith.constant 0 : i32
    return %c0_i32, %c0_i32_0 : i32, i32
  }
  func.func @transform_9(%arg0: i32) -> (i32, i32) {
    %c0_i32 = arith.constant 0 : i32
    %c0_i32_0 = arith.constant 0 : i32
    return %c0_i32, %arg0 : i32, i32
  }
}

</mosaic_0001>

<llo_original>
// kernel: tpu_custom_call.1
$region0: #{tpu_custom_call.1}
  #allocation0 [shape = 'u32[]', space=smem, size = 0x4, offset = 0x4, fixed_abs, tag = 'smem constant byte address 0x4 - core index']
  #allocation1 [shape = 'u32[144,128]{1,0:T(1,128)}', space=vmem, size = 0x12000, scoped, tag = 'internal scratch']
  #allocation2 [shape = 'f32[1,1]{1,0:T(1,128)S(1)}', space=vmem, size = 0x200, scoped, tag = 'scoped memory for tpu_custom_call.1']
  %s0 = inlined_call_operand.vmem [shape: f32[16,8], index: 0, kind: input, shape index: {}]
  %s1 = inlined_call_operand.hbm [shape: f32[8,32], index: 1, kind: input, shape index: {}]
  %s2 = inlined_call_operand.vmem [shape: f32[1,32], index: 2, kind: input, shape index: {}]
  %s3 = inlined_call_operand.vmem [shape: f32[32,32], index: 3, kind: input, shape index: {}]
  %s4 = inlined_call_operand.vmem [shape: f32[1,32], index: 4, kind: input, shape index: {}]
  %s5 = inlined_call_operand.hbm [shape: f32[32,32], index: 5, kind: input, shape index: {}]
  %s6 = inlined_call_operand.vmem [shape: f32[1,32], index: 6, kind: input, shape index: {}]
  %s7 = inlined_call_operand.vmem [shape: f32[1,32], index: 7, kind: input, shape index: {}]
  %s8 = inlined_call_operand.<no memory space> [shape: f32[1,1], index: 8, kind: input, shape index: {}]
  %s9 = inlined_call_operand.hbm [shape: f32[1,16], index: 9, kind: output, shape index: {}]
  %s10 = sld [smem:[#allocation0]]
  $region54: #{tpu_custom_call.1} parent=0
    _
  %s12 = ssub.s32 1, %s10
  %s13 = scalar_select 0, %s12, %s10
  %v14 = vstv %s8
  %15 = vst [vmem:[#allocation2] sm:$0x1] %v14
  $region1: #{tpu_custom_call.1} parent=0
    #allocation3 [shape = 'u8[4096]{0}', space=vmem, size = 0x1000, scoped, tag = 'input window, operand 1, single buffered']
    #allocation4 [shape = 's32[1]{0}', space=sflag, size = 0x4, scoped, tag = 'scoped memory for tpu_custom_call.1']
    #allocation5 [shape = 's32[1]{0}', space=sflag, size = 0x4, scoped, tag = 'scoped memory for tpu_custom_call.1']
    #allocation6 [shape = 'u8[16384]{0}', space=vmem, size = 0x4000, scoped, tag = 'input window, operand 5, single buffered']
    #allocation7 [shape = 's32[1]{0}', space=sflag, size = 0x4, scoped, tag = 'scoped memory for tpu_custom_call.1']
    #allocation8 [shape = 'u8[512]{0}', space=vmem, size = 0x400, scoped, tag = 'output window, operand 0, single buffered']
    %16 = vsyncpa [#allocation4], 0
    %17 = vsyncpa [#allocation7], 0
    %18 = vsyncpa [#allocation5], 0
    // Predicated region
    $region2: #{tpu_custom_call.1} parent=1 // pred_check
      _
    $region3: #{tpu_custom_call.1} parent=1 // pred_check_branch
      %20 = sbr.rel (0) target = $region5
    $region4: #{tpu_custom_call.1} parent=1 // pred_region
      _
    $region5: #{tpu_custom_call.1} parent=1 // pred_fallthru
      _
    // Predicated region
    $region6: #{tpu_custom_call.1} parent=1 // pred_check
      _
    $region7: #{tpu_custom_call.1} parent=1 // pred_check_branch
      %22 = sbr.rel (0) target = $region9
    $region8: #{tpu_custom_call.1} parent=1 // pred_region
      %s24 = ssub.s32 128, 128
      %25 = vsyncadd [#allocation4], %s24
      %s27 = sshll.u32 [#allocation3], 4
      %s28 = int_to_ptr.vmem [resolvable:$true] %s27
      %30 = dma.hbm_to_vmem [thread:$0]  %s1, 128, %s28, [#allocation4]
    $region9: #{tpu_custom_call.1} parent=1 // pred_fallthru
      _
    // Predicated region
    $region10: #{tpu_custom_call.1} parent=1 // pred_check
      _
    $region11: #{tpu_custom_call.1} parent=1 // pred_check_branch
      %32 = sbr.rel (0) target = $region13
    $region12: #{tpu_custom_call.1} parent=1 // pred_region
      _
    $region13: #{tpu_custom_call.1} parent=1 // pred_fallthru
      _
    // Predicated region
    $region14: #{tpu_custom_call.1} parent=1 // pred_check
      _
    $region15: #{tpu_custom_call.1} parent=1 // pred_check_branch
      %34 = sbr.rel (0) target = $region17
    $region16: #{tpu_custom_call.1} parent=1 // pred_region
      _
    $region17: #{tpu_custom_call.1} parent=1 // pred_fallthru
      _
    // Predicated region
    $region18: #{tpu_custom_call.1} parent=1 // pred_check
      _
    $region19: #{tpu_custom_call.1} parent=1 // pred_check_branch
      %36 = sbr.rel (0) target = $region21
    $region20: #{tpu_custom_call.1} parent=1 // pred_region
      _
    $region21: #{tpu_custom_call.1} parent=1 // pred_fallthru
      _
    // Predicated region
    $region22: #{tpu_custom_call.1} parent=1 // pred_check
      _
    $region23: #{tpu_custom_call.1} parent=1 // pred_check_branch
      %38 = sbr.rel (0) target = $region25
    $region24: #{tpu_custom_call.1} parent=1 // pred_region
      %s40 = ssub.s32 512, 512
      %41 = vsyncadd [#allocation7], %s40
      %s42 = sshll.u32 [#allocation6], 4
      %s43 = int_to_ptr.vmem [resolvable:$true] %s42
      %48 = dma.hbm_to_vmem [thread:$0]  %s5, 512, %s43, [#allocation7], 128, 128, 8
    $region25: #{tpu_custom_call.1} parent=1 // pred_fallthru
      _
    // Predicated region
    $region26: #{tpu_custom_call.1} parent=1 // pred_check
      _
    $region27: #{tpu_custom_call.1} parent=1 // pred_check_branch
      %50 = sbr.rel (0) target = $region29
    $region28: #{tpu_custom_call.1} parent=1 // pred_region
      _
    $region29: #{tpu_custom_call.1} parent=1 // pred_fallthru
      _
    // Predicated region
    $region30: #{tpu_custom_call.1} parent=1 // pred_check
      _
    $region31: #{tpu_custom_call.1} parent=1 // pred_check_branch
      %52 = sbr.rel (0) target = $region33
    $region32: #{tpu_custom_call.1} parent=1 // pred_region
      _
    $region33: #{tpu_custom_call.1} parent=1 // pred_fallthru
      _
    // Predicated region
    $region34: #{tpu_custom_call.1} parent=1 // pred_check
      _
    $region35: #{tpu_custom_call.1} parent=1 // pred_check_branch
      %54 = sbr.rel (0) target = $region37
    $region36: #{tpu_custom_call.1} parent=1 // pred_region
      _
    $region37: #{tpu_custom_call.1} parent=1 // pred_fallthru
      _
    // Predicated region
    $region38: #{tpu_custom_call.1} parent=1 // pred_check
      _
    $region39: #{tpu_custom_call.1} parent=1 // pred_check_branch
      %56 = sbr.rel (0) target = $region41
    $region40: #{tpu_custom_call.1} parent=1 // pred_region
      %57 = dma.done [#allocation4], 128
    $region41: #{tpu_custom_call.1} parent=1 // pred_fallthru
      _
    // Predicated region
    $region42: #{tpu_custom_call.1} parent=1 // pred_check
      _
    $region43: #{tpu_custom_call.1} parent=1 // pred_check_branch
      %59 = sbr.rel (0) target = $region45
    $region44: #{tpu_custom_call.1} parent=1 // pred_region
      %60 = dma.done [#allocation7], 512
    $region45: #{tpu_custom_call.1} parent=1 // pred_fallthru
      _
    %v61 = vld [vmem:[%s0] sm:$0xff]
    %v62 = vld [vmem:[%s0 + $0x8] sm:$0xff]
    %v63 = vld [vmem:[#allocation3] sm:$0xff]
    %v64 = vld [vmem:[%s2] sm:$0x1]
    %v66 = vlaneseq
    %v67 = vshrl.u32 %v66, 7
    %v68 = vsub.s32 0, %v67
    %v69 = vrot.slane %v64, %v68
    %vm71 = vcmask 64512
    %v73 = vsel %vm71, %v61, 0
    %v76 = vsel %vm71, %v62, 0
    %78 = vmatprep.subr.mxu0 0.0
    %79 = vmatpush1.msra.mxu0 %v63
    %80 = vmatprep.subr.mxu0 0.0
    %81 = vmatpush1.msra.mxu0 0.0
    %82 = vmatprep.subr.mxu0 0.0
    %83 = vmatpush1.msra.mxu0 0.0
    %84 = vmatprep.subr.mxu0 0.0
    %85 = vmatpush1.msra.mxu0 0.0
    %86 = vmatprep.subr.mxu0 0.0
    %87 = vmatpush1.msra.mxu0 0.0
    %88 = vmatprep.subr.mxu0 0.0
    %89 = vmatpush1.msra.mxu0 0.0
    %90 = vmatprep.subr.mxu0 0.0
    %91 = vmatpush1.msra.mxu0 0.0
    %92 = vmatprep.subr.mxu0 0.0
    %93 = vmatpush1.msra.mxu0 0.0
    %94 = vmatprep.subr.mxu0 0.0
    %95 = vmatpush1.msra.mxu0 0.0
    %96 = vmatprep.subr.mxu0 0.0
    %97 = vmatpush1.msra.mxu0 0.0
    %98 = vmatprep.subr.mxu0 0.0
    %99 = vmatpush1.msra.mxu0 0.0
    %100 = vmatprep.subr.mxu0 0.0
    %101 = vmatpush1.msra.mxu0 0.0
    %102 = vmatprep.subr.mxu0 0.0
    %103 = vmatpush1.msra.mxu0 0.0
    %104 = vmatprep.subr.mxu0 0.0
    %105 = vmatpush1.msra.mxu0 0.0
    %106 = vmatprep.subr.mxu0 0.0
    %107 = vmatpush1.msra.mxu0 0.0
    %108 = vmatprep.subr.mxu0 0.0
    %109 = vmatpush1.msra.mxu0 0.0
    %110 = vmatprep.subr.mxu0 0.0
    %111 = vmatpush1.msra.mxu0 0.0
    %112 = vmatprep.subr.mxu0 0.0
    %113 = vmatpush1.msra.mxu0 0.0
    %114 = vmatprep.subr.mxu0 0.0
    %115 = vmatpush1.msra.mxu0 0.0
    %116 = vmatprep.subr.mxu0 0.0
    %117 = vmatpush1.msra.mxu0 0.0
    %118 = vmatprep.subr.mxu0 0.0
    %119 = vmatpush1.msra.mxu0 0.0
    %120 = vmatprep.subr.mxu0 0.0
    %121 = vmatpush1.msra.mxu0 0.0
    %122 = vmatprep.subr.mxu0 0.0
    %123 = vmatpush1.msra.mxu0 0.0
    %124 = vmatprep.subr.mxu0 0.0
    %125 = vmatpush1.msra.mxu0 0.0
    %126 = vmatprep.subr.mxu0 0.0
    %127 = vmatpush1.msra.mxu0 0.0
    %128 = vmatprep.subr.mxu0 0.0
    %129 = vmatpush1.msra.mxu0 0.0
    %130 = vmatprep.subr.mxu0 0.0
    %131 = vmatpush1.msra.mxu0 0.0
    %132 = vmatprep.subr.mxu0 0.0
    %133 = vmatpush1.msra.mxu0 0.0
    %134 = vmatprep.subr.mxu0 0.0
    %135 = vmatpush1.msra.mxu0 0.0
    %136 = vmatprep.subr.mxu0 0.0
    %137 = vmatpush1.msra.mxu0 0.0
    %138 = vmatprep.subr.mxu0 0.0
    %139 = vmatpush1.msra.mxu0 0.0
    %140 = vmatprep.subr.mxu0 0.0
    %141 = vmatpush1.msra.mxu0 0.0
    %142 = vmatprep.mubr.f32.mxu0 0.0
    %143 = vmatmul.mubr.f32.gmra.mrb[0].mxu0 %v73
    %v144 = vpop.f32.mrb[0].mxu0
    %v145 = vadd.f32 %v69, %v144
    %v146 = vpop.f32.mrb[0].mxu0
    %147 = vmatprep.mubr.f32.mxu0 0.0
    %148 = vmatmul.mubr.f32.gmra.mrb[0].mxu0 %v76
    %v149 = vpop.f32.mrb[0].mxu0
    %v150 = vadd.f32 %v69, %v149
    %v151 = vpop.f32.mrb[0].mxu0
    %152 = vdwg.mxu0
    %v153 = vmax.f32 %v145, 0.0
    %v154 = vmax.f32 %v150, 0.0
    %v155 = vld [vmem:[%s3] sm:$0xff]
    %v156 = vld [vmem:[%s3 + $0x8] sm:$0xff]
    %v157 = vld [vmem:[%s3 + $0x10] sm:$0xff]
    %v158 = vld [vmem:[%s3 + $0x18] sm:$0xff]
    %v159 = vld [vmem:[%s4] sm:$0x1]
    %v161 = vlaneseq
    %v162 = vshrl.u32 %v161, 7
    %v163 = vsub.s32 0, %v162
    %v164 = vrot.slane %v159, %v163
    %vm166 = vcmask 261120
    %v168 = vsel %vm166, %v153, 0
    %v171 = vsel %vm166, %v154, 0
    %173 = vmatprep.subr.mxu0 0.0
    %174 = vmatpush1.msra.mxu0 %v155
    %175 = vmatprep.subr.mxu0 0.0
    %176 = vmatpush1.msra.mxu0 %v156
    %177 = vmatprep.subr.mxu0 0.0
    %178 = vmatpush1.msra.mxu0 %v157
    %179 = vmatprep.subr.mxu0 0.0
    %180 = vmatpush1.msra.mxu0 %v158
    %181 = vmatprep.subr.mxu0 0.0
    %182 = vmatpush1.msra.mxu0 0.0
    %183 = vmatprep.subr.mxu0 0.0
    %184 = vmatpush1.msra.mxu0 0.0
    %185 = vmatprep.subr.mxu0 0.0
    %186 = vmatpush1.msra.mxu0 0.0
    %187 = vmatprep.subr.mxu0 0.0
    %188 = vmatpush1.msra.mxu0 0.0
    %189 = vmatprep.subr.mxu0 0.0
    %190 = vmatpush1.msra.mxu0 0.0
    %191 = vmatprep.subr.mxu0 0.0
    %192 = vmatpush1.msra.mxu0 0.0
    %193 = vmatprep.subr.mxu0 0.0
    %194 = vmatpush1.msra.mxu0 0.0
    %195 = vmatprep.subr.mxu0 0.0
    %196 = vmatpush1.msra.mxu0 0.0
    %197 = vmatprep.subr.mxu0 0.0
    %198 = vmatpush1.msra.mxu0 0.0
    %199 = vmatprep.subr.mxu0 0.0
    %200 = vmatpush1.msra.mxu0 0.0
    %201 = vmatprep.subr.mxu0 0.0
    %202 = vmatpush1.msra.mxu0 0.0
    %203 = vmatprep.subr.mxu0 0.0
    %204 = vmatpush1.msra.mxu0 0.0
    %205 = vmatprep.subr.mxu0 0.0
    %206 = vmatpush1.msra.mxu0 0.0
    %207 = vmatprep.subr.mxu0 0.0
    %208 = vmatpush1.msra.mxu0 0.0
    %209 = vmatprep.subr.mxu0 0.0
    %210 = vmatpush1.msra.mxu0 0.0
    %211 = vmatprep.subr.mxu0 0.0
    %212 = vmatpush1.msra.mxu0 0.0
    %213 = vmatprep.subr.mxu0 0.0
    %214 = vmatpush1.msra.mxu0 0.0
    %215 = vmatprep.subr.mxu0 0.0
    %216 = vmatpush1.msra.mxu0 0.0
    %217 = vmatprep.subr.mxu0 0.0
    %218 = vmatpush1.msra.mxu0 0.0
    %219 = vmatprep.subr.mxu0 0.0
    %220 = vmatpush1.msra.mxu0 0.0
    %221 = vmatprep.subr.mxu0 0.0
    %222 = vmatpush1.msra.mxu0 0.0
    %223 = vmatprep.subr.mxu0 0.0
    %224 = vmatpush1.msra.mxu0 0.0
    %225 = vmatprep.subr.mxu0 0.0
    %226 = vmatpush1.msra.mxu0 0.0
    %227 = vmatprep.subr.mxu0 0.0
    %228 = vmatpush1.msra.mxu0 0.0
    %229 = vmatprep.subr.mxu0 0.0
    %230 = vmatpush1.msra.mxu0 0.0
    %231 = vmatprep.subr.mxu0 0.0
    %232 = vmatpush1.msra.mxu0 0.0
    %233 = vmatprep.subr.mxu0 0.0
    %234 = vmatpush1.msra.mxu0 0.0
    %235 = vmatprep.subr.mxu0 0.0
    %236 = vmatpush1.msra.mxu0 0.0
    %237 = vmatprep.mubr.f32.mxu0 0.0
    %238 = vmatmul.mubr.f32.gmra.mrb[0].mxu0 %v168
    %v239 = vpop.f32.mrb[0].mxu0
    %v240 = vadd.f32 %v164, %v239
    %v241 = vpop.f32.mrb[0].mxu0
    %242 = vmatprep.mubr.f32.mxu0 0.0
    %243 = vmatmul.mubr.f32.gmra.mrb[0].mxu0 %v171
    %v244 = vpop.f32.mrb[0].mxu0
    %v245 = vadd.f32 %v164, %v244
    %v246 = vpop.f32.mrb[0].mxu0
    %247 = vdwg.mxu0
    %v248 = vmax.f32 %v240, 0.0
    %v249 = vmax.f32 %v245, 0.0
    %v250 = vld [vmem:[#allocation6] sm:$0xff]
    %v251 = vld [vmem:[#allocation6 + $0x8] sm:$0xff]
    %v252 = vld [vmem:[#allocation6 + $0x10] sm:$0xff]
    %v253 = vld [vmem:[#allocation6 + $0x18] sm:$0xff]
    %v254 = vld [vmem:[%s6] sm:$0x1]
    %v256 = vlaneseq
    %v257 = vshrl.u32 %v256, 7
    %v258 = vsub.s32 0, %v257
    %v259 = vrot.slane %v254, %v258
    %v262 = vsel %vm166, %v248, 0
    %v265 = vsel %vm166, %v249, 0
    %267 = vmatprep.subr.mxu0 0.0
    %268 = vmatpush1.msra.mxu0 %v250
    %269 = vmatprep.subr.mxu0 0.0
    %270 = vmatpush1.msra.mxu0 %v251
    %271 = vmatprep.subr.mxu0 0.0
    %272 = vmatpush1.msra.mxu0 %v252
    %273 = vmatprep.subr.mxu0 0.0
    %274 = vmatpush1.msra.mxu0 %v253
    %275 = vmatprep.subr.mxu0 0.0
    %276 = vmatpush1.msra.mxu0 0.0
    %277 = vmatprep.subr.mxu0 0.0
    %278 = vmatpush1.msra.mxu0 0.0
    %279 = vmatprep.subr.mxu0 0.0
    %280 = vmatpush1.msra.mxu0 0.0
    %281 = vmatprep.subr.mxu0 0.0
    %282 = vmatpush1.msra.mxu0 0.0
    %283 = vmatprep.subr.mxu0 0.0
    %284 = vmatpush1.msra.mxu0 0.0
    %285 = vmatprep.subr.mxu0 0.0
    %286 = vmatpush1.msra.mxu0 0.0
    %287 = vmatprep.subr.mxu0 0.0
    %288 = vmatpush1.msra.mxu0 0.0
    %289 = vmatprep.subr.mxu0 0.0
    %290 = vmatpush1.msra.mxu0 0.0
    %291 = vmatprep.subr.mxu0 0.0
    %292 = vmatpush1.msra.mxu0 0.0
    %293 = vmatprep.subr.mxu0 0.0
    %294 = vmatpush1.msra.mxu0 0.0
    %295 = vmatprep.subr.mxu0 0.0
    %296 = vmatpush1.msra.mxu0 0.0
    %297 = vmatprep.subr.mxu0 0.0
    %298 = vmatpush1.msra.mxu0 0.0
    %299 = vmatprep.subr.mxu0 0.0
    %300 = vmatpush1.msra.mxu0 0.0
    %301 = vmatprep.subr.mxu0 0.0
    %302 = vmatpush1.msra.mxu0 0.0
    %303 = vmatprep.subr.mxu0 0.0
    %304 = vmatpush1.msra.mxu0 0.0
    %305 = vmatprep.subr.mxu0 0.0
    %306 = vmatpush1.msra.mxu0 0.0
    %307 = vmatprep.subr.mxu0 0.0
    %308 = vmatpush1.msra.mxu0 0.0
    %309 = vmatprep.subr.mxu0 0.0
    %310 = vmatpush1.msra.mxu0 0.0
    %311 = vmatprep.subr.mxu0 0.0
    %312 = vmatpush1.msra.mxu0 0.0
    %313 = vmatprep.subr.mxu0 0.0
    %314 = vmatpush1.msra.mxu0 0.0
    %315 = vmatprep.subr.mxu0 0.0
    %316 = vmatpush1.msra.mxu0 0.0
    %317 = vmatprep.subr.mxu0 0.0
    %318 = vmatpush1.msra.mxu0 0.0
    %319 = vmatprep.subr.mxu0 0.0
    %320 = vmatpush1.msra.mxu0 0.0
    %321 = vmatprep.subr.mxu0 0.0
    %322 = vmatpush1.msra.mxu0 0.0
    %323 = vmatprep.subr.mxu0 0.0
    %324 = vmatpush1.msra.mxu0 0.0
    %325 = vmatprep.subr.mxu0 0.0
    %326 = vmatpush1.msra.mxu0 0.0
    %327 = vmatprep.subr.mxu0 0.0
    %328 = vmatpush1.msra.mxu0 0.0
    %329 = vmatprep.subr.mxu0 0.0
    %330 = vmatpush1.msra.mxu0 0.0
    %331 = vmatprep.mubr.f32.mxu0 0.0
    %332 = vmatmul.mubr.f32.gmra.mrb[0].mxu0 %v262
    %v333 = vpop.f32.mrb[0].mxu0
    %v334 = vadd.f32 %v259, %v333
    %v335 = vpop.f32.mrb[0].mxu0
    %336 = vmatprep.mubr.f32.mxu0 0.0
    %337 = vmatmul.mubr.f32.gmra.mrb[0].mxu0 %v265
    %v338 = vpop.f32.mrb[0].mxu0
    %v339 = vadd.f32 %v259, %v338
    %v340 = vpop.f32.mrb[0].mxu0
    %341 = vdwg.mxu0
    %v342 = vmax.f32 %v334, 0.0
    %v343 = vmax.f32 %v339, 0.0
    %v344 = vld [vmem:[%s7] sm:$0x1]
    %v345 = vld [vmem:[#allocation2] sm:$0x1]
    %v347 = vlaneseq
    %v348 = vshrl.u32 %v347, 7
    %v349 = vsub.s32 0, %v348
    %v350 = vrot.slane %v344, %v349
    %v352 = vmul.f32 %v342, %v350
    %v353 = vmul.f32 %v343, %v350
    %v354 = vsel %vm166, %v352, 0.0
    %355 = vadd.xlane.f32.xlu0 %v354
    %v356 = vpop.xlane.xlu0 %355
    %v357 = vsel %vm166, %v353, 0.0
    %358 = vadd.xlane.f32.xlu0 %v357
    %v359 = vpop.xlane.xlu0 %358
    %361 = vset.pattern.permute.xlu0 0
    %362 = vperm.xlu0 %361, %v345
    %v363 = vpop.permute.xlu0 %362
    %v365 = vlaneseq
    %v366 = vshrl.u32 %v365, 7
    %v367 = vsub.s32 0, %v366
    %v368 = vrot.slane %v363, %v367
    %v369 = vadd.f32 %v356, %v368
    %v370 = vadd.f32 %v359, %v368
    %v373 = vlaneseq
    %v374 = vand.u32 %v373, 127
    %v375 = vlaneseq
    %v376 = vshrl.u32 %v375, 7
    %v377 = vsub.s32 %v374, %v376
    %v378 = vrot.slane %v369, %v377
    %v379 = vadd.s32 %v374, 4294967288
    %v380 = vlaneseq
    %v381 = vshrl.u32 %v380, 7
    %v382 = vsub.s32 %v379, %v381
    %v383 = vrot.slane %v370, %v382
    %vm384 = vcmask 130112
    %v385 = vsel %vm384, %v383, %v378
    %vm387 = vcmask 122880
    %388 = vst.msk [vmem:[#allocation8] sm:$0x1] %vm387, %v385
    // Predicated region
    $region46: #{tpu_custom_call.1} parent=1 // pred_check
      _
    $region47: #{tpu_custom_call.1} parent=1 // pred_check_branch
      %390 = sbr.rel (0) target = $region49
    $region48: #{tpu_custom_call.1} parent=1 // pred_region
      %s392 = ssub.s32 16, 16
      %393 = vsyncadd [#allocation5], %s392
      %s395 = sshll.u32 [#allocation8], 4
      %s396 = int_to_ptr.vmem [resolvable:$true] %s395
      %398 = dma.vmem_to_hbm [thread:$0]  %s396, 16, %s9, [#allocation5]
    $region49: #{tpu_custom_call.1} parent=1 // pred_fallthru
      _
    // Predicated region
    $region50: #{tpu_custom_call.1} parent=1 // pred_check
      _
    $region51: #{tpu_custom_call.1} parent=1 // pred_check_branch
      %400 = sbr.rel (0) target = $region53
    $region52: #{tpu_custom_call.1} parent=1 // pred_region
      %401 = dma.done [#allocation5], 16
    $region53: #{tpu_custom_call.1} parent=1 // pred_fallthru
      _
    %402 = vsyncpa [#allocation4], 1
    %403 = vsyncpa [#allocation7], 1
    %404 = vsyncpa [#allocation5], 1

</llo_original>
